<compile_context>
chip_gen: v7x
topology: tpu7x:2x2x1
jax: 0.10.0
libtpu: 0.0.40
codegen_flags: <defaults>
</compile_context>

<pallas_src>
import functools

import jax
import jax.numpy as jnp
from jax.experimental import pallas as pl
from jax.experimental.pallas import tpu as pltpu


def _vq_kernel(x_ref, w_ref, w2_ref, q_ref, used_ref, sse_ref, *, hw_valid):
    t = pl.program_id(1)  # reduction ("arbitrary") axis over H*W tiles

    @pl.when(t == 0)
    def _():
        used_ref[...] = jnp.zeros_like(used_ref)
        sse_ref[...] = jnp.zeros_like(sse_ref)

    x = x_ref[...].astype(jnp.float32)   # (C, TN)  channels on sublanes, positions on lanes
    w = w_ref[...].astype(jnp.float32)   # (K, C)
    c, tn = x.shape
    k = w.shape[0]

    # distance up to a per-column constant: |w|^2 - 2 w.x   (|x|^2 dropped, argmin-invariant)
    xw = jax.lax.dot_general(w, x, (((1,), (0,)), ((), ())),
                             preferred_element_type=jnp.float32)       # (K, TN)
    dist = w2_ref[...] - 2.0 * xw                                       # (K, TN)

    # argmin over K with first-occurrence tie-break (matches torch.argmin)
    k_iota = jax.lax.broadcasted_iota(jnp.int32, (k, tn), 0)
    min_d = jnp.min(dist, axis=0, keepdims=True)                        # (1, TN)
    cand = jnp.where(dist <= min_d, k_iota, k)                          # sentinel = K
    idx = jnp.min(cand, axis=0, keepdims=True)                          # (1, TN)
    enc = (k_iota == idx).astype(jnp.float32)                           # (K, TN) one-hot

    # quantized, channels-first: q[c, n] = sum_k w[k, c] * enc[k, n]
    q = jax.lax.dot_general(w, enc, (((0,), (0,)), ((), ())),
                            preferred_element_type=jnp.float32)          # (C, TN)
    q_ref[...] = q.astype(q_ref.dtype)

    if hw_valid is None:                                                 # static: no padding
        enc_v = enc
        diff = q - x
    else:                                                                # mask padded columns
        col = t * tn + jax.lax.broadcasted_iota(jnp.int32, (1, tn), 1)
        valid = (col < hw_valid).astype(jnp.float32)                     # (1, TN)
        enc_v = enc * valid
        diff = (q - x) * valid

    # accumulate directly into the VMEM-resident per-batch output blocks (canonical P3)
    used_ref[...] += jnp.sum(enc_v, axis=1, keepdims=True)               # (K, 1)
    sse_ref[...] += jnp.sum(diff * diff, axis=(0, 1), keepdims=True)     # (1, 1)


def _round_up(x, m):
    return ((x + m - 1) // m) * m


def _vmem_capacity_bytes():
    try:
        return int(pltpu.get_tpu_info().vmem_capacity_bytes)
    except Exception:  # pragma: no cover - defensive fallback
        return 64 << 20  # conservative: the smallest per-core VMEM (v7x)


def _per_column_vmem_bytes(c, k, x_itemsize):
    """Live VMEM bytes per output column (lane), with (8,128) padding applied."""
    c_p = _round_up(c, 8)
    k_p = _round_up(k, 8)
    return (2 * c_p * x_itemsize   # x block, double-buffered
            + 2 * c_p * 4          # q block, double-buffered
            + 4 * k_p * 4          # xw / dist / cand / enc temporaries
            + 2 * c_p * 4)         # q / diff f32 temporaries


def _choose_tile_hw(hw, per_col_bytes, budget_bytes, max_tile=4096):
    """Largest 128-multiple column tile fitting the budget, minimizing H*W padding."""
    cap = max(128, (budget_bytes // per_col_bytes) // 128 * 128)
    cap = min(cap, max_tile)
    num_tiles = -(-hw // cap)                      # cdiv
    tile = _round_up(-(-hw // num_tiles), 128)     # <= cap, multiple of 128
    return tile, tile * num_tiles


@jax.jit
def vector_quantizer_forward(x_nchw, codebook):
    """Returns (e_loss, quantized_nchw, used_indices) like VectorQuantizer.forward (eval)."""
    b, c, h, w = x_nchw.shape
    k, d = codebook.shape
    assert d == c, "embedding_dim must equal channel dim"
    commitment_cost = 0.25

    hw = h * w
    x_cf = x_nchw.reshape(b, c, hw)                # channels-first flatten: free reshape
    x_itemsize = jnp.dtype(x_cf.dtype).itemsize

    wf = codebook.astype(jnp.float32)
    w2 = jnp.sum(wf * wf, axis=1, keepdims=True)   # (K, 1), hoisted out of the grid loop

    # ---- padding- and generation-aware VMEM budget --------------------------------------
    c_p, c_l = _round_up(c, 8), _round_up(c, 128)
    k_p = _round_up(k, 8)
    vmem_ceiling = int(_vmem_capacity_bytes() * 0.6)     # ~38 MiB v7x, ~77 MiB v5e/v6e
    fixed = (k_p * c_l * 4            # codebook (single-buffered)
             + k_p * 128 * 4          # |w|^2     (single-buffered)
             + 2 * k_p * 128 * 4      # used output block
             + 2 * 8 * 128 * 4)       # sse  output block
    per_col = _per_column_vmem_bytes(c, k, x_itemsize)
    tile_budget = max(4 << 20, vmem_ceiling - fixed - (2 << 20))
    tile_hw, hw_padded = _choose_tile_hw(hw, per_col, tile_budget)
    num_tiles = hw_padded // tile_hw

    if hw_padded != hw:
        x_cf = jnp.pad(x_cf, ((0, 0), (0, 0), (0, hw_padded - hw)))

    est = per_col * tile_hw + fixed
    vmem_limit_bytes = int(min(max(est + (4 << 20), 24 << 20), vmem_ceiling))

    kernel = functools.partial(_vq_kernel,
                               hw_valid=None if hw_padded == hw else hw)

    q_cf, used_b, sse_b = pl.pallas_call(
        kernel,
        out_shape=(
            jax.ShapeDtypeStruct((b, c, hw_padded), jnp.float32),
            jax.ShapeDtypeStruct((b, k, 1), jnp.float32),
            jax.ShapeDtypeStruct((b, 1, 1), jnp.float32),
        ),
        grid_spec=pltpu.PrefetchScalarGridSpec(
            num_scalar_prefetch=0,
            grid=(b, num_tiles),
            in_specs=[
                pl.BlockSpec((None, c, tile_hw), lambda bi, ti: (bi, 0, ti)),
                pl.BlockSpec((k, d), lambda bi, ti: (0, 0),
                             pipeline_mode=pl.Buffered(1)),
                pl.BlockSpec((k, 1), lambda bi, ti: (0, 0),
                             pipeline_mode=pl.Buffered(1)),
            ],
            out_specs=[
                pl.BlockSpec((None, c, tile_hw), lambda bi, ti: (bi, 0, ti)),
                pl.BlockSpec((None, k, 1), lambda bi, ti: (bi, 0, 0)),
                pl.BlockSpec((None, 1, 1), lambda bi, ti: (bi, 0, 0)),
            ],
        ),
        compiler_params=pltpu.CompilerParams(
            dimension_semantics=("parallel", "arbitrary"),
            vmem_limit_bytes=vmem_limit_bytes,
        ),
    )(x_cf, wf, w2)

    e_loss = commitment_cost * (jnp.sum(sse_b) / jnp.float32(b * hw * c))  # F.mse_loss mean
    # straight-through: forward value is just the quantized tensor (already channels-first)
    quantized_nchw = q_cf[:, :, :hw].reshape(b, c, h, w)
    used_indices = jnp.sum(used_b, axis=(0, 2))                            # (K,)
    return e_loss, quantized_nchw, used_indices


if __name__ == "__main__":
    # Small, module-consistent shapes: B=2, C=embedding_dim=4, H=W=16, K=16 codes.
    B, C, H, W = 2, 4, 16, 16
    num_embeddings, embedding_dim = 16, C

    key = jax.random.PRNGKey(0)
    kx, kw = jax.random.split(key)
    x = jax.random.normal(kx, (B, C, H, W), dtype=jnp.float32)
    # codebook.weight.data.uniform_(-1/K, 1/K), deterministic in-script
    codebook = jax.random.uniform(
        kw, (num_embeddings, embedding_dim), dtype=jnp.float32,
        minval=-1.0 / num_embeddings, maxval=1.0 / num_embeddings)

    e_loss, quantized, used_indices = vector_quantizer_forward(x, codebook)
    jax.block_until_ready((e_loss, quantized, used_indices))

    # Lightweight sanity check against pure-JAX reference
    inputs = jnp.transpose(x, (0, 2, 3, 1)).reshape(-1, C)
    dist = (jnp.sum(inputs ** 2, 1, keepdims=True) + jnp.sum(codebook ** 2, 1)
            - 2.0 * inputs @ codebook.T)
    idx = jnp.argmin(dist, axis=1)
    q_ref = codebook[idx].reshape(B, H, W, C).transpose(0, 3, 1, 2)
    assert jnp.allclose(quantized, q_ref, atol=1e-5)
    assert jnp.allclose(e_loss, 0.25 * jnp.mean((q_ref - x) ** 2), atol=1e-6)
    assert jnp.allclose(
        used_indices,
        jnp.sum(jax.nn.one_hot(idx, num_embeddings), axis=0), atol=1e-5)

    print("KERNEL_OK")
</pallas_src>

<mosaic_0001>
module attributes {stable_mosaic.version = 11 : i64} {
  func.func @_vq_kernel(%arg0: i32, %arg1: i32, %arg2: memref<1x4x256xf32, #tpu.memory_space<vmem>>, %arg3: memref<16x4xf32, #tpu.memory_space<vmem>>, %arg4: memref<16x1xf32, #tpu.memory_space<vmem>>, %arg5: memref<1x4x256xf32, #tpu.memory_space<vmem>>, %arg6: memref<1x16x1xf32, #tpu.memory_space<vmem>>, %arg7: memref<1x1x1xf32, #tpu.memory_space<vmem>>) attributes {dimension_semantics = [#tpu.dimension_semantics<parallel>, #tpu.dimension_semantics<arbitrary>], iteration_bounds = array<i64: 2, 1>, scalar_prefetch = 0 : i64, scratch_operands = 0 : i64, tpu.core_type = #tpu.core_type<tc>, window_params = [{transform_indices = @transform_0, window_bounds = array<i64: 1, 4, 256>}, {pipeline_mode = #tpu.pipeline_mode<synchronous>, transform_indices = @transform_1, window_bounds = array<i64: 16, 4>}, {pipeline_mode = #tpu.pipeline_mode<synchronous>, transform_indices = @transform_2, window_bounds = array<i64: 16, 1>}, {transform_indices = @transform_3, window_bounds = array<i64: 1, 4, 256>}, {transform_indices = @transform_4, window_bounds = array<i64: 1, 16, 1>}, {transform_indices = @transform_5, window_bounds = array<i64: 1, 1, 1>}]} {
    %c0_i32 = arith.constant 0 : i32
    %0 = arith.cmpi eq, %arg1, %c0_i32 : i32
    %1 = arith.extui %0 : i1 to i32
    %c0_i32_0 = arith.constant 0 : i32
    %2 = arith.cmpi ne, %1, %c0_i32_0 : i32
    scf.if %2 {
      %cst_28 = arith.constant 0.000000e+00 : f32
      %50 = vector.broadcast %cst_28 : f32 to vector<16x1xf32>
      %c0_29 = arith.constant 0 : index
      %c0_30 = arith.constant 0 : index
      %c0_31 = arith.constant 0 : index
      %51 = vector.load %arg6[%c0_29, %c0_30, %c0_31] : memref<1x16x1xf32, #tpu.memory_space<vmem>>, vector<1x16x1xf32>
      %52 = vector.shape_cast %51 : vector<1x16x1xf32> to vector<16x1xf32>
      %53 = vector.shape_cast %50 : vector<16x1xf32> to vector<1x16x1xf32>
      tpu.vector_store %arg6[%c0_29, %c0_30, %c0_31], %53 {strides = array<i32>} : memref<1x16x1xf32, #tpu.memory_space<vmem>>, vector<1x16x1xf32>,
      %cst_32 = arith.constant 0.000000e+00 : f32
      %54 = vector.broadcast %cst_32 : f32 to vector<1x1xf32>
      %c0_33 = arith.constant 0 : index
      %c0_34 = arith.constant 0 : index
      %c0_35 = arith.constant 0 : index
      %55 = vector.load %arg7[%c0_33, %c0_34, %c0_35] : memref<1x1x1xf32, #tpu.memory_space<vmem>>, vector<1x1x1xf32>
      %56 = vector.shape_cast %55 : vector<1x1x1xf32> to vector<1x1xf32>
      %57 = vector.shape_cast %54 : vector<1x1xf32> to vector<1x1x1xf32>
      tpu.vector_store %arg7[%c0_33, %c0_34, %c0_35], %57 {strides = array<i32>} : memref<1x1x1xf32, #tpu.memory_space<vmem>>, vector<1x1x1xf32>,
    } else {
    }
    %c0 = arith.constant 0 : index
    %c0_1 = arith.constant 0 : index
    %c0_2 = arith.constant 0 : index
    %3 = vector.load %arg2[%c0, %c0_1, %c0_2] : memref<1x4x256xf32, #tpu.memory_space<vmem>>, vector<1x4x256xf32>
    %4 = vector.shape_cast %3 : vector<1x4x256xf32> to vector<4x256xf32>
    %c0_3 = arith.constant 0 : index
    %c0_4 = arith.constant 0 : index
    %5 = vector.load %arg3[%c0_3, %c0_4] : memref<16x4xf32, #tpu.memory_space<vmem>>, vector<16x4xf32>
    %cst = arith.constant dense<0.000000e+00> : vector<16x256xf32>
    %6 = tpu.matmul %5, %4, %cst {dimension_numbers = #tpu.dot_dimension_numbers<[1], [0], [0], [1], [0, 0, 1, 1], [], []>} : vector<16x4xf32>, vector<4x256xf32>, vector<16x256xf32> -> vector<16x256xf32>
    %c0_5 = arith.constant 0 : index
    %c0_6 = arith.constant 0 : index
    %7 = vector.load %arg4[%c0_5, %c0_6] : memref<16x1xf32, #tpu.memory_space<vmem>>, vector<16x1xf32>
    %cst_7 = arith.constant 2.000000e+00 : f32
    %8 = vector.broadcast %cst_7 : f32 to vector<16x256xf32>
    %9 = arith.mulf %8, %6 : vector<16x256xf32>
    %10 = vector.broadcast %7 : vector<16x1xf32> to vector<16x256xf32>
    %11 = arith.subf %10, %9 : vector<16x256xf32>
    %12 = tpu.iota {dimensions = array<i32: 0>} : vector<16x256xi32>
    %cst_8 = arith.constant dense<0x7F800000> : vector<256xf32>
    %13 = vector.multi_reduction <minimumf>, %11, %cst_8 [0] : vector<16x256xf32> to vector<256xf32>
    %14 = vector.shape_cast %13 : vector<256xf32> to vector<1x256xf32>
    %15 = vector.broadcast %14 : vector<1x256xf32> to vector<16x256xf32>
    %16 = arith.cmpf ole, %11, %15 : vector<16x256xf32>
    %c16_i32 = arith.constant 16 : i32
    %17 = vector.broadcast %c16_i32 : i32 to vector<16x256xi32>
    %18 = arith.select %16, %12, %17 : vector<16x256xi1>, vector<16x256xi32>
    %cst_9 = arith.constant dense<2147483647> : vector<256xi32>
    %19 = vector.multi_reduction <minsi>, %18, %cst_9 [0] : vector<16x256xi32> to vector<256xi32>
    %20 = vector.shape_cast %19 : vector<256xi32> to vector<1x256xi32>
    %21 = vector.broadcast %20 : vector<1x256xi32> to vector<16x256xi32>
    %22 = arith.cmpi eq, %12, %21 : vector<16x256xi32>
    %23 = arith.extui %22 : vector<16x256xi1> to vector<16x256xi32>
    %24 = arith.sitofp %23 : vector<16x256xi32> to vector<16x256xf32>
    %cst_10 = arith.constant dense<0.000000e+00> : vector<4x256xf32>
    %25 = tpu.matmul %5, %24, %cst_10 {dimension_numbers = #tpu.dot_dimension_numbers<[0], [0], [1], [1], [0, 1, 1, 1], [], []>} : vector<16x4xf32>, vector<16x256xf32>, vector<4x256xf32> -> vector<4x256xf32>
    %c0_11 = arith.constant 0 : index
    %c0_12 = arith.constant 0 : index
    %c0_13 = arith.constant 0 : index
    %26 = vector.load %arg5[%c0_11, %c0_12, %c0_13] : memref<1x4x256xf32, #tpu.memory_space<vmem>>, vector<1x4x256xf32>
    %27 = vector.shape_cast %26 : vector<1x4x256xf32> to vector<4x256xf32>
    %28 = vector.shape_cast %25 : vector<4x256xf32> to vector<1x4x256xf32>
    tpu.vector_store %arg5[%c0_11, %c0_12, %c0_13], %28 {strides = array<i32>} : memref<1x4x256xf32, #tpu.memory_space<vmem>>, vector<1x4x256xf32>,
    %29 = arith.subf %25, %4 : vector<4x256xf32>
    %c0_14 = arith.constant 0 : index
    %c0_15 = arith.constant 0 : index
    %c0_16 = arith.constant 0 : index
    %30 = vector.load %arg6[%c0_14, %c0_15, %c0_16] : memref<1x16x1xf32, #tpu.memory_space<vmem>>, vector<1x16x1xf32>
    %31 = vector.shape_cast %30 : vector<1x16x1xf32> to vector<16x1xf32>
    %cst_17 = arith.constant dense<0.000000e+00> : vector<16xf32>
    %32 = vector.multi_reduction <add>, %24, %cst_17 [1] : vector<16x256xf32> to vector<16xf32>
    %33 = vector.shape_cast %32 : vector<16xf32> to vector<16x1xf32>
    %34 = arith.addf %31, %33 : vector<16x1xf32>
    %c0_18 = arith.constant 0 : index
    %c0_19 = arith.constant 0 : index
    %c0_20 = arith.constant 0 : index
    %35 = vector.load %arg6[%c0_18, %c0_19, %c0_20] : memref<1x16x1xf32, #tpu.memory_space<vmem>>, vector<1x16x1xf32>
    %36 = vector.shape_cast %35 : vector<1x16x1xf32> to vector<16x1xf32>
    %37 = vector.shape_cast %34 : vector<16x1xf32> to vector<1x16x1xf32>
    tpu.vector_store %arg6[%c0_18, %c0_19, %c0_20], %37 {strides = array<i32>} : memref<1x16x1xf32, #tpu.memory_space<vmem>>, vector<1x16x1xf32>,
    %c0_21 = arith.constant 0 : index
    %c0_22 = arith.constant 0 : index
    %c0_23 = arith.constant 0 : index
    %38 = vector.load %arg7[%c0_21, %c0_22, %c0_23] : memref<1x1x1xf32, #tpu.memory_space<vmem>>, vector<1x1x1xf32>
    %39 = vector.shape_cast %38 : vector<1x1x1xf32> to vector<1x1xf32>
    %40 = arith.mulf %29, %29 : vector<4x256xf32>
    %41 = vector.shape_cast %40 : vector<4x256xf32> to vector<1x4x256xf32>
    %cst_24 = arith.constant dense<0.000000e+00> : vector<1xf32>
    %42 = vector.multi_reduction <add>, %41, %cst_24 [1, 2] : vector<1x4x256xf32> to vector<1xf32>
    %43 = vector.shape_cast %42 : vector<1xf32> to vector<1x1x1xf32>
    %44 = vector.extract %43[0, 0, 0] : f32 from vector<1x1x1xf32>
    %45 = vector.broadcast %44 : f32 to vector<1x1xf32>
    %46 = arith.addf %39, %45 : vector<1x1xf32>
    %c0_25 = arith.constant 0 : index
    %c0_26 = arith.constant 0 : index
    %c0_27 = arith.constant 0 : index
    %47 = vector.load %arg7[%c0_25, %c0_26, %c0_27] : memref<1x1x1xf32, #tpu.memory_space<vmem>>, vector<1x1x1xf32>
    %48 = vector.shape_cast %47 : vector<1x1x1xf32> to vector<1x1xf32>
    %49 = vector.shape_cast %46 : vector<1x1xf32> to vector<1x1x1xf32>
    tpu.vector_store %arg7[%c0_25, %c0_26, %c0_27], %49 {strides = array<i32>} : memref<1x1x1xf32, #tpu.memory_space<vmem>>, vector<1x1x1xf32>,
    return
  }
  func.func @transform_0(%arg0: i32, %arg1: i32) -> (i32, i32, i32) {
    %c0_i32 = arith.constant 0 : i32
    %c0_i32_0 = arith.constant 0 : i32
    return %arg0, %c0_i32, %arg1 : i32, i32, i32
  }
  func.func @transform_1(%arg0: i32, %arg1: i32) -> (i32, i32) {
    %c0_i32 = arith.constant 0 : i32
    %c0_i32_0 = arith.constant 0 : i32
    %c0_i32_1 = arith.constant 0 : i32
    return %c0_i32, %c0_i32_0 : i32, i32
  }
  func.func @transform_2(%arg0: i32, %arg1: i32) -> (i32, i32) {
    %c0_i32 = arith.constant 0 : i32
    %c0_i32_0 = arith.constant 0 : i32
    %c0_i32_1 = arith.constant 0 : i32
    return %c0_i32, %c0_i32_0 : i32, i32
  }
  func.func @transform_3(%arg0: i32, %arg1: i32) -> (i32, i32, i32) {
    %c0_i32 = arith.constant 0 : i32
    %c0_i32_0 = arith.constant 0 : i32
    return %arg0, %c0_i32, %arg1 : i32, i32, i32
  }
  func.func @transform_4(%arg0: i32, %arg1: i32) -> (i32, i32, i32) {
    %c0_i32 = arith.constant 0 : i32
    %c0_i32_0 = arith.constant 0 : i32
    %c0_i32_1 = arith.constant 0 : i32
    return %arg0, %c0_i32, %c0_i32_0 : i32, i32, i32
  }
  func.func @transform_5(%arg0: i32, %arg1: i32) -> (i32, i32, i32) {
    %c0_i32 = arith.constant 0 : i32
    %c0_i32_0 = arith.constant 0 : i32
    %c0_i32_1 = arith.constant 0 : i32
    return %arg0, %c0_i32, %c0_i32_0 : i32, i32, i32
  }
}

</mosaic_0001>

<llo_original>
// kernel: vector_quantizer_forward.1
$region0: #{vector_quantizer_forward.1}
  #allocation0 [shape = 'u32[]', space=smem, size = 0x4, offset = 0x4, fixed_abs, tag = 'smem constant byte address 0x4 - core index']
  #allocation1 [shape = 'u32[144,128]{1,0:T(1,128)}', space=vmem, size = 0x12000, scoped, tag = 'internal scratch']
  %s0 = inlined_call_operand.vmem [shape: f32[2,4,256], index: 0, kind: input, shape index: {}]
  %s1 = inlined_call_operand.vmem [shape: f32[16,4], index: 1, kind: input, shape index: {}]
  %s2 = inlined_call_operand.vmem [shape: f32[16,1], index: 2, kind: input, shape index: {}]
  %s3 = inlined_call_operand.vmem [shape: f32[2,4,256], index: 3, kind: output, shape index: {0}]
  %s4 = inlined_call_operand.vmem [shape: f32[2,16,1], index: 4, kind: output, shape index: {1}]
  %s5 = inlined_call_operand.vmem [shape: f32[2,1,1], index: 5, kind: output, shape index: {2}]
  %6 = xla_tuple %s3, %s4, %s5
  %s7 = sld [smem:[#allocation0]]
  $region65: #{vector_quantizer_forward.1} parent=0
    _
  %s9 = ssub.s32 1, %s7
  %s10 = scalar_select 0, %s9, %s7
  loop: start=0, step=1, limit=4
  $region2: #{vector_quantizer_forward.1} parent=0 // loop_pre_header
    _
  $region3: #{vector_quantizer_forward.1} parent=0 // loop_header
    %s12 = sphi 0, %s16
    %p13 = scmp.ge.s32.totalorder %s12, 4
    %s19 = sphi 0, %s31
    %s20 = sphi 0, %s27
    %s21 = sphi 0, %s19
    %s22 = sphi 0, %s20
    %s23 = sphi 0, %s21
    %s24 = sphi 0, %s22
    %s36 = sphi 0, %s38
    %s39 = sphi 0, %s36
    %s40 = sphi 0, %s39
    %s56 = sphi 0, %s40
    %s60 = sphi 0, %s60
    %s62 = sphi 0, %s60
    %s63 = sphi 0, %s62
    %s77 = sphi 0, %s63
    %s81 = sphi 0, %s81
    %s83 = sphi 0, %s81
    %s84 = sphi 0, %s83
    %s98 = sphi 0, %s84
    %s106 = sphi 0, %s108
    %s109 = sphi 0, %s106
    %s110 = sphi 0, %s109
    %s126 = sphi 0, %s110
    %s132 = sphi 0, %s134
    %s135 = sphi 0, %s132
    %s136 = sphi 0, %s135
    %s152 = sphi 0, %s136
    %s158 = sphi 0, %s160
    %s161 = sphi 0, %s158
    %s162 = sphi 0, %s161
    %s178 = sphi 0, %s162
  $region4: #{vector_quantizer_forward.1} parent=0 // loop_header_branch
    %15 = sbr.rel (%p13) target = $region8
  $region5: #{vector_quantizer_forward.1} parent=0 // loop_body
    %s17 = ssub.s32 %s12, 1
    %s18 = ssub.s32 %s12, 2
    %s25 = sadd.s32 1, %s20
    %p26 = scmp.ge.s32.totalorder %s25, 1
    %s27 = scalar_select %p26, 0, %s25
    %s28 = sadd.s32 1, %s19
    %s29 = scalar_select %p26, %s28, %s19
    %p30 = scmp.ge.s32.totalorder %s29, 2
    %s31 = scalar_select %p30, 0, %s29
    %s32 = ssub.s32 %s19, %s31
    %s33 = ssub.s32 %s20, %s27
    %s34 = sor.u32 %s32, %s33
    %p35 = scmp.eq.s32.totalorder %s34, 0
    %s37 = sadd.s32 %s36, 1
    %s38 = scalar_select %p35, %s36, %s37
    %p41 = pneg %p35
    %p42 = scmp.eq.s32.totalorder %s12, 1
    %p43 = por %p41, %p42
    %p44 = scmp.ne.s32.totalorder %s36, %s39
    %p45 = scmp.eq.s32.totalorder %s12, 0
    %p46 = por %p44, %p45
    %p47 = scmp.ne.s32.totalorder %s36, %s39
    %p48 = scmp.eq.s32.totalorder %s17, 1
    %p49 = por %p47, %p48
    %p50 = scmp.ne.s32.totalorder %s39, %s40
    %p51 = scmp.eq.s32.totalorder %s17, 0
    %p52 = por %p50, %p51
    %p53 = scmp.ne.s32.totalorder %s39, %s40
    %p54 = scmp.eq.s32.totalorder %s18, 1
    %p55 = por %p53, %p54
    %p57 = scmp.ne.s32.totalorder %s40, %s56
    %p58 = scmp.eq.s32.totalorder %s18, 0
    %p59 = por %p57, %p58
    %s61 = sadd.s32 %s60, 1
    %p64 = scmp.eq.s32.totalorder %s12, 1
    %p65 = scmp.ne.s32.totalorder %s60, %s62
    %p66 = scmp.eq.s32.totalorder %s12, 0
    %p67 = por %p65, %p66
    %p68 = scmp.ne.s32.totalorder %s60, %s62
    %p69 = scmp.eq.s32.totalorder %s17, 1
    %p70 = por %p68, %p69
    %p71 = scmp.ne.s32.totalorder %s62, %s63
    %p72 = scmp.eq.s32.totalorder %s17, 0
    %p73 = por %p71, %p72
    %p74 = scmp.ne.s32.totalorder %s62, %s63
    %p75 = scmp.eq.s32.totalorder %s18, 1
    %p76 = por %p74, %p75
    %p78 = scmp.ne.s32.totalorder %s63, %s77
    %p79 = scmp.eq.s32.totalorder %s18, 0
    %p80 = por %p78, %p79
    %s82 = sadd.s32 %s81, 1
    %p85 = scmp.eq.s32.totalorder %s12, 1
    %p86 = scmp.ne.s32.totalorder %s81, %s83
    %p87 = scmp.eq.s32.totalorder %s12, 0
    %p88 = por %p86, %p87
    %p89 = scmp.ne.s32.totalorder %s81, %s83
    %p90 = scmp.eq.s32.totalorder %s17, 1
    %p91 = por %p89, %p90
    %p92 = scmp.ne.s32.totalorder %s83, %s84
    %p93 = scmp.eq.s32.totalorder %s17, 0
    %p94 = por %p92, %p93
    %p95 = scmp.ne.s32.totalorder %s83, %s84
    %p96 = scmp.eq.s32.totalorder %s18, 1
    %p97 = por %p95, %p96
    %p99 = scmp.ne.s32.totalorder %s84, %s98
    %p100 = scmp.eq.s32.totalorder %s18, 0
    %p101 = por %p99, %p100
    %s102 = ssub.s32 %s19, %s31
    %s103 = ssub.s32 %s20, %s27
    %s104 = sor.u32 %s102, %s103
    %p105 = scmp.eq.s32.totalorder %s104, 0
    %s107 = sadd.s32 %s106, 1
    %s108 = scalar_select %p105, %s106, %s107
    %p111 = pneg %p105
    %p112 = scmp.eq.s32.totalorder %s12, 1
    %p113 = por %p111, %p112
    %p114 = scmp.ne.s32.totalorder %s106, %s109
    %p115 = scmp.eq.s32.totalorder %s12, 0
    %p116 = por %p114, %p115
    %p117 = scmp.ne.s32.totalorder %s106, %s109
    %p118 = scmp.eq.s32.totalorder %s17, 1
    %p119 = por %p117, %p118
    %p120 = scmp.ne.s32.totalorder %s109, %s110
    %p121 = scmp.eq.s32.totalorder %s17, 0
    %p122 = por %p120, %p121
    %p123 = scmp.ne.s32.totalorder %s109, %s110
    %p124 = scmp.eq.s32.totalorder %s18, 1
    %p125 = por %p123, %p124
    %p127 = scmp.ne.s32.totalorder %s110, %s126
    %p128 = scmp.eq.s32.totalorder %s18, 0
    %p129 = por %p127, %p128
    %s130 = ssub.s32 %s19, %s31
    %p131 = scmp.eq.s32.totalorder %s130, 0
    %s133 = sadd.s32 %s132, 1
    %s134 = scalar_select %p131, %s132, %s133
    %p137 = pneg %p131
    %p138 = scmp.eq.s32.totalorder %s12, 1
    %p139 = por %p137, %p138
    %p140 = scmp.ne.s32.totalorder %s132, %s135
    %p141 = scmp.eq.s32.totalorder %s12, 0
    %p142 = por %p140, %p141
    %p143 = scmp.ne.s32.totalorder %s132, %s135
    %p144 = scmp.eq.s32.totalorder %s17, 1
    %p145 = por %p143, %p144
    %p146 = scmp.ne.s32.totalorder %s135, %s136
    %p147 = scmp.eq.s32.totalorder %s17, 0
    %p148 = por %p146, %p147
    %p149 = scmp.ne.s32.totalorder %s135, %s136
    %p150 = scmp.eq.s32.totalorder %s18, 1
    %p151 = por %p149, %p150
    %p153 = scmp.ne.s32.totalorder %s136, %s152
    %p154 = scmp.eq.s32.totalorder %s18, 0
    %p155 = por %p153, %p154
    %s156 = ssub.s32 %s19, %s31
    %p157 = scmp.eq.s32.totalorder %s156, 0
    %s159 = sadd.s32 %s158, 1
    %s160 = scalar_select %p157, %s158, %s159
    %p163 = pneg %p157
    %p164 = scmp.eq.s32.totalorder %s12, 1
    %p165 = por %p163, %p164
    %p166 = scmp.ne.s32.totalorder %s158, %s161
    %p167 = scmp.eq.s32.totalorder %s12, 0
    %p168 = por %p166, %p167
    %p169 = scmp.ne.s32.totalorder %s158, %s161
    %p170 = scmp.eq.s32.totalorder %s17, 1
    %p171 = por %p169, %p170
    %p172 = scmp.ne.s32.totalorder %s161, %s162
    %p173 = scmp.eq.s32.totalorder %s17, 0
    %p174 = por %p172, %p173
    %p175 = scmp.ne.s32.totalorder %s161, %s162
    %p176 = scmp.eq.s32.totalorder %s18, 1
    %p177 = por %p175, %p176
    %p179 = scmp.ne.s32.totalorder %s162, %s178
    %p180 = scmp.eq.s32.totalorder %s18, 0
    %p181 = por %p179, %p180
    %p182 = scmp.le.s32.totalorder 1, %s12
    %p183 = scmp.lt.s32.totalorder %s12, 3
    %p184 = pnand %p182, %p183
    %p185 = pneg %p184
    // Predicated region
    $region9: #{vector_quantizer_forward.1} parent=5 // pred_check
      _
    $region10: #{vector_quantizer_forward.1} parent=5 // pred_check_branch
      %187 = sbr.rel (%p184) target = $region12
    $region11: #{vector_quantizer_forward.1} parent=5 // pred_region
      %s188 = ssub.s32 %s12, 1
      // Predicated region
      $region13: #{vector_quantizer_forward.1} parent=11 // pred_check
        %p189 = pneg %p73
      $region14: #{vector_quantizer_forward.1} parent=11 // pred_check_branch
        %191 = sbr.rel (%p189) target = $region16
      $region15: #{vector_quantizer_forward.1} parent=11 // pred_region
        _
      $region16: #{vector_quantizer_forward.1} parent=11 // pred_fallthru
        _
      // Predicated region
      $region17: #{vector_quantizer_forward.1} parent=11 // pred_check
        %p192 = pneg %p94
      $region18: #{vector_quantizer_forward.1} parent=11 // pred_check_branch
        %194 = sbr.rel (%p192) target = $region20
      $region19: #{vector_quantizer_forward.1} parent=11 // pred_region
        _
      $region20: #{vector_quantizer_forward.1} parent=11 // pred_fallthru
        _
    $region12: #{vector_quantizer_forward.1} parent=5 // pred_fallthru
      _
    %p195 = scmp.lt.s32.totalorder %s12, 2
    // Predicated region
    $region21: #{vector_quantizer_forward.1} parent=5 // pred_check
      %p196 = pneg %p195
    $region22: #{vector_quantizer_forward.1} parent=5 // pred_check_branch
      %198 = sbr.rel (%p196) target = $region24
    $region23: #{vector_quantizer_forward.1} parent=5 // pred_region
      // Predicated region
      $region25: #{vector_quantizer_forward.1} parent=23 // pred_check
        %p199 = pneg %p46
      $region26: #{vector_quantizer_forward.1} parent=23 // pred_check_branch
        %201 = sbr.rel (%p199) target = $region28
      $region27: #{vector_quantizer_forward.1} parent=23 // pred_region
        %s202 = smul.u32 2, %s20
        %p203 = scmp.lt.s32.totalorder %s19, 1
        %s204 = scalar_select %p203, %s19, 1
        %p205 = scmp.lt.s32.totalorder %s202, 1
        %s206 = scalar_select %p205, %s202, 1
        %s207 = smul.addr %s204, 2
        %s208 = sadd.s32 %s206, %s207
        %s209 = smul.addr %s208, 4
        %s210 = scalar_lea.vmem %s0, %s209
        %s211 = smul.u32 2, %s20
      $region28: #{vector_quantizer_forward.1} parent=23 // pred_fallthru
        _
    $region24: #{vector_quantizer_forward.1} parent=5 // pred_fallthru
      _
    %p212 = scmp.le.s32.totalorder 1, %s12
    %p213 = scmp.lt.s32.totalorder %s12, 3
    %p214 = pnand %p212, %p213
    %p215 = pneg %p214
    // Predicated region
    $region29: #{vector_quantizer_forward.1} parent=5 // pred_check
      _
    $region30: #{vector_quantizer_forward.1} parent=5 // pred_check_branch
      %217 = sbr.rel (%p214) target = $region32
    $region31: #{vector_quantizer_forward.1} parent=5 // pred_region
      %s218 = ssub.s32 %s12, 1
      %s219 = smul.u32 2, %s22
      %p220 = scmp.lt.s32.totalorder %s21, 1
      %s221 = scalar_select %p220, %s21, 1
      %p222 = scmp.lt.s32.totalorder %s219, 1
      %s223 = scalar_select %p222, %s219, 1
      %s224 = smul.addr %s221, 2
      %s225 = sadd.s32 %s223, %s224
      %s226 = smul.addr %s225, 4
      %s227 = scalar_lea.vmem %s0, %s226
      %p228 = pneg %p52
      %p229 = pneg %p49
      %p230 = pneg %p73
      %p231 = pneg %p70
      %p232 = pneg %p94
      %p233 = pneg %p91
      %p234 = pneg %p122
      %p235 = pneg %p119
      %s236 = smul.u32 2, %s22
      %p237 = scmp.lt.s32.totalorder %s21, 1
      %s238 = scalar_select %p237, %s21, 1
      %p239 = scmp.lt.s32.totalorder %s236, 1
      %s240 = scalar_select %p239, %s236, 1
      %s241 = smul.addr %s238, 2
      %s242 = sadd.s32 %s240, %s241
      %s243 = smul.addr %s242, 4
      %s244 = scalar_lea.vmem %s3, %s243
      %p245 = pneg %p148
      %p246 = pneg %p145
      %p247 = scmp.lt.s32.totalorder %s21, 1
      %s248 = scalar_select %p247, %s21, 1
      %s249 = smul.addr %s248, 2
      %s250 = smul.addr %s249, 8
      %s251 = scalar_lea.vmem %s4, %s250
      %p252 = pneg %p174
      %p253 = pneg %p171
      %p254 = scmp.lt.s32.totalorder %s21, 1
      %s255 = scalar_select %p254, %s21, 1
      %s256 = scalar_lea.vmem %s5, %s255
      %s257 = smul.u32 2, %s22
      %p258 = scmp.lt.s32.totalorder %s21, 1
      %s259 = scalar_select %p258, %s21, 1
      %p260 = scmp.lt.s32.totalorder %s257, 1
      %s261 = scalar_select %p260, %s257, 1
      %s262 = smul.addr %s259, 2
      %s263 = sadd.s32 %s261, %s262
      %s264 = smul.addr %s263, 4
      %s265 = scalar_lea.vmem %s0, %s264
      %s266 = smul.u32 2, %s22
      %s267 = smul.u32 2, %s22
      %p268 = scmp.lt.s32.totalorder %s21, 1
      %s269 = scalar_select %p268, %s21, 1
      %p270 = scmp.lt.s32.totalorder %s267, 1
      %s271 = scalar_select %p270, %s267, 1
      %s272 = smul.addr %s269, 2
      %s273 = sadd.s32 %s271, %s272
      %s274 = smul.addr %s273, 4
      %s275 = scalar_lea.vmem %s3, %s274
      %s276 = smul.u32 2, %s22
      %p277 = scmp.lt.s32.totalorder %s21, 1
      %s278 = scalar_select %p277, %s21, 1
      %s279 = smul.addr %s278, 2
      %s280 = smul.addr %s279, 8
      %s281 = scalar_lea.vmem %s4, %s280
      %p282 = scmp.lt.s32.totalorder %s21, 1
      %s283 = scalar_select %p282, %s21, 1
      %s284 = scalar_lea.vmem %s5, %s283
      %p285 = scmp.eq.s32.totalorder %s22, 0
      // Predicated region
      $region33: #{vector_quantizer_forward.1} parent=31 // pred_check
        %p286 = pneg %p285
      $region34: #{vector_quantizer_forward.1} parent=31 // pred_check_branch
        %288 = sbr.rel (%p286) target = $region36
      $region35: #{vector_quantizer_forward.1} parent=31 // pred_region
        %vm289 = vcmask 7168
        %290 = vst.msk [vmem:[%s281] sm:$0xff] %vm289, 0.0
        %291 = vst.msk [vmem:[%s281 + $0x8] sm:$0xff] %vm289, 0.0
        %vm292 = vcmask 0
        %293 = vst.msk [vmem:[%s284] sm:$0x1] %vm292, 0.0
      $region36: #{vector_quantizer_forward.1} parent=31 // pred_fallthru
        _
      %v294 = vld [vmem:[%s265] sm:$0xff]
      %v295 = vld [vmem:[%s1] sm:$0xff]
      %v296 = vld [vmem:[%s1 + $0x8] sm:$0xff]
      %v298 = vcombine.high %v294, %v294
      %vm299 = vcmask 31744
      %v301 = vsel %vm299, %v295, 0
      %v304 = vsel %vm299, %v296, 0
      %vm306 = vcmask 1043456
      %v307 = vsel %vm306, %v294, 0
      %v309 = vsel %vm306, %v298, 0
      %311 = vmatprep.subr.mxu0 %v309
      %312 = vmatpush1.msra.mxu0 %v307
      %313 = vmatprep.subr.mxu0 0.0
      %314 = vmatpush1.msra.mxu0 0.0
      %315 = vmatprep.subr.mxu0 0.0
      %316 = vmatpush1.msra.mxu0 0.0
      %317 = vmatprep.subr.mxu0 0.0
      %318 = vmatpush1.msra.mxu0 0.0
      %319 = vmatprep.subr.mxu0 0.0
      %320 = vmatpush1.msra.mxu0 0.0
      %321 = vmatprep.subr.mxu0 0.0
      %322 = vmatpush1.msra.mxu0 0.0
      %323 = vmatprep.subr.mxu0 0.0
      %324 = vmatpush1.msra.mxu0 0.0
      %325 = vmatprep.subr.mxu0 0.0
      %326 = vmatpush1.msra.mxu0 0.0
      %327 = vmatprep.subr.mxu0 0.0
      %328 = vmatpush1.msra.mxu0 0.0
      %329 = vmatprep.subr.mxu0 0.0
      %330 = vmatpush1.msra.mxu0 0.0
      %331 = vmatprep.subr.mxu0 0.0
      %332 = vmatpush1.msra.mxu0 0.0
      %333 = vmatprep.subr.mxu0 0.0
      %334 = vmatpush1.msra.mxu0 0.0
      %335 = vmatprep.subr.mxu0 0.0
      %336 = vmatpush1.msra.mxu0 0.0
      %337 = vmatprep.subr.mxu0 0.0
      %338 = vmatpush1.msra.mxu0 0.0
      %339 = vmatprep.subr.mxu0 0.0
      %340 = vmatpush1.msra.mxu0 0.0
      %341 = vmatprep.subr.mxu0 0.0
      %342 = vmatpush1.msra.mxu0 0.0
      %343 = vmatprep.subr.mxu0 0.0
      %344 = vmatpush1.msra.mxu0 0.0
      %345 = vmatprep.subr.mxu0 0.0
      %346 = vmatpush1.msra.mxu0 0.0
      %347 = vmatprep.subr.mxu0 0.0
      %348 = vmatpush1.msra.mxu0 0.0
      %349 = vmatprep.subr.mxu0 0.0
      %350 = vmatpush1.msra.mxu0 0.0
      %351 = vmatprep.subr.mxu0 0.0
      %352 = vmatpush1.msra.mxu0 0.0
      %353 = vmatprep.subr.mxu0 0.0
      %354 = vmatpush1.msra.mxu0 0.0
      %355 = vmatprep.subr.mxu0 0.0
      %356 = vmatpush1.msra.mxu0 0.0
      %357 = vmatprep.subr.mxu0 0.0
      %358 = vmatpush1.msra.mxu0 0.0
      %359 = vmatprep.subr.mxu0 0.0
      %360 = vmatpush1.msra.mxu0 0.0
      %361 = vmatprep.subr.mxu0 0.0
      %362 = vmatpush1.msra.mxu0 0.0
      %363 = vmatprep.subr.mxu0 0.0
      %364 = vmatpush1.msra.mxu0 0.0
      %365 = vmatprep.subr.mxu0 0.0
      %366 = vmatpush1.msra.mxu0 0.0
      %367 = vmatprep.subr.mxu0 0.0
      %368 = vmatpush1.msra.mxu0 0.0
      %369 = vmatprep.subr.mxu0 0.0
      %370 = vmatpush1.msra.mxu0 0.0
      %371 = vmatprep.subr.mxu0 0.0
      %372 = vmatpush1.msra.mxu0 0.0
      %373 = vmatprep.subr.mxu0 0.0
      %374 = vmatpush1.msra.mxu0 0.0
      %375 = vmatprep.mubr.f32.mxu0 0.0
      %376 = vmatmul.mubr.f32.gmra.mrb[0].mxu0 %v301
      %v377 = vpop.f32.mrb[0].mxu0
      %v378 = vadd.f32 0.0, %v377
      %v379 = vpop.f32.mrb[0].mxu0
      %v380 = vadd.f32 0.0, %v379
      %381 = vmatprep.mubr.f32.mxu0 0.0
      %382 = vmatmul.mubr.f32.gmra.mrb[0].mxu0 %v304
      %v383 = vpop.f32.mrb[0].mxu0
      %v384 = vadd.f32 0.0, %v383
      %v385 = vpop.f32.mrb[0].mxu0
      %v386 = vadd.f32 0.0, %v385
      %387 = vdwg.mxu0
      %v388 = vld [vmem:[%s2] sm:$0xff]
      %v389 = vld [vmem:[%s2 + $0x8] sm:$0xff]
      %v390 = vmul.f32 %v378, 2.0
      %v391 = vmul.f32 %v380, 2.0
      %v392 = vmul.f32 %v384, 2.0
      %v393 = vmul.f32 %v386, 2.0
      %395 = vset.pattern.permute.xlu0 0
      %396 = vperm.xlu0 %395, %v388
      %v397 = vpop.permute.xlu0 %396
      %400 = vset.pattern.permute.xlu0 0
      %401 = vperm.xlu0 %400, %v389
      %v402 = vpop.permute.xlu0 %401
      %v404 = vsub.f32 %v397, %v390
      %v405 = vsub.f32 %v397, %v391
      %v406 = vsub.f32 %v402, %v392
      %v407 = vsub.f32 %v402, %v393
      %v408 = vlaneseq
      %v409 = vshrl.u32 %v408, 7
      %v410 = vadd.s32 %v409, 8
      %v411 = vmin.f32 %v404, %v406
      %v412 = vrot.slane %v411, 4
      %v413 = vmin.f32 %v411, %v412
      %v414 = vrot.slane %v413, 2
      %v415 = vmin.f32 %v413, %v414
      %v416 = vrot.slane %v415, 1
      %v417 = vmin.f32 %v415, %v416
      %v418 = vmin.f32 %v405, %v407
      %v419 = vrot.slane %v418, 4
      %v420 = vmin.f32 %v418, %v419
      %v421 = vrot.slane %v420, 2
      %v422 = vmin.f32 %v420, %v421
      %v423 = vrot.slane %v422, 1
      %v424 = vmin.f32 %v422, %v423
      %vm425 = vcmp.le.f32.partialorder %v404, %v417
      %vm426 = vcmp.le.f32.partialorder %v405, %v424
      %vm427 = vcmp.le.f32.partialorder %v406, %v417
      %vm428 = vcmp.le.f32.partialorder %v407, %v424
      %v429 = vsel %vm425, %v409, 16
      %v430 = vsel %vm426, %v409, 16
      %v431 = vsel %vm427, %v410, 16
      %v432 = vsel %vm428, %v410, 16
      %vm433 = vcmp.lt.s32.totalorder %v429, %v431
      %v434 = vsel %vm433, %v429, %v431
      %v435 = vrot.slane %v434, 4
      %vm436 = vcmp.lt.s32.totalorder %v434, %v435
      %v437 = vsel %vm436, %v434, %v435
      %v438 = vrot.slane %v437, 2
      %vm439 = vcmp.lt.s32.totalorder %v437, %v438
      %v440 = vsel %vm439, %v437, %v438
      %v441 = vrot.slane %v440, 1
      %vm442 = vcmp.lt.s32.totalorder %v440, %v441
      %v443 = vsel %vm442, %v440, %v441
      %vm444 = vcmp.lt.s32.totalorder %v430, %v432
      %v445 = vsel %vm444, %v430, %v432
      %v446 = vrot.slane %v445, 4
      %vm447 = vcmp.lt.s32.totalorder %v445, %v446
      %v448 = vsel %vm447, %v445, %v446
      %v449 = vrot.slane %v448, 2
      %vm450 = vcmp.lt.s32.totalorder %v448, %v449
      %v451 = vsel %vm450, %v448, %v449
      %v452 = vrot.slane %v451, 1
      %vm453 = vcmp.lt.s32.totalorder %v451, %v452
      %v454 = vsel %vm453, %v451, %v452
      %vm455 = vcmp.eq.s32.totalorder %v409, %v443
      %vm456 = vcmp.eq.s32.totalorder %v409, %v454
      %vm457 = vcmp.eq.s32.totalorder %v410, %v443
      %vm458 = vcmp.eq.s32.totalorder %v410, %v454
      %v459 = vsel %vm455, 1, 0
      %v460 = vsel %vm456, 1, 0
      %v461 = vsel %vm457, 1, 0
      %v462 = vsel %vm458, 1, 0
      %v463 = vcvt.s32.f32 %v459
      %v464 = vcvt.s32.f32 %v460
      %v465 = vcvt.s32.f32 %v461
      %v466 = vcvt.s32.f32 %v462
      %467 = vxpose.xlu0.b32.start [1/16] %v295, 128
      %468 = vxpose.xlu0.b32.cont [2/16] %v296, 128
      %469 = vxpose.xlu0.b32.cont [3/16] 0.0, 128
      %470 = vxpose.xlu0.b32.cont [4/16] 0.0, 128
      %471 = vxpose.xlu0.b32.cont [5/16] 0.0, 128
      %472 = vxpose.xlu0.b32.cont [6/16] 0.0, 128
      %473 = vxpose.xlu0.b32.cont [7/16] 0.0, 128
      %474 = vxpose.xlu0.b32.cont [8/16] 0.0, 128
      %475 = vxpose.xlu0.b32.cont [9/16] 0.0, 128
      %476 = vxpose.xlu0.b32.cont [10/16] 0.0, 128
      %477 = vxpose.xlu0.b32.cont [11/16] 0.0, 128
      %478 = vxpose.xlu0.b32.cont [12/16] 0.0, 128
      %479 = vxpose.xlu0.b32.cont [13/16] 0.0, 128
      %480 = vxpose.xlu0.b32.cont [14/16] 0.0, 128
      %481 = vxpose.xlu0.b32.cont [15/16] 0.0, 128
      %482 = vxpose.xlu0.b32.end [16/16] 0.0, 128
      %v483 = vpop.trf.xlu0
      %v484 = vpop.trf.xlu0
      %v485 = vpop.trf.xlu0
      %v486 = vpop.trf.xlu0
      %v487 = vpop.trf.xlu0
      %v488 = vpop.trf.xlu0
      %v489 = vpop.trf.xlu0
      %v490 = vpop.trf.xlu0
      %v491 = vpop.trf.xlu0
      %v492 = vpop.trf.xlu0
      %v493 = vpop.trf.xlu0
      %v494 = vpop.trf.xlu0
      %v495 = vpop.trf.xlu0
      %v496 = vpop.trf.xlu0
      %v497 = vpop.trf.xlu0
      %v498 = vpop.trf.xlu0
      %vm499 = vcmask 130048
      %v501 = vsel %vm499, %v483, 0
      %503 = vmatprep.subr.mxu0 %v464
      %504 = vmatpush1.msra.mxu0 %v463
      %505 = vmatprep.subr.mxu0 %v466
      %506 = vmatpush1.msra.mxu0 %v465
      %507 = vmatprep.subr.mxu0 0.0
      %508 = vmatpush1.msra.mxu0 0.0
      %509 = vmatprep.subr.mxu0 0.0
      %510 = vmatpush1.msra.mxu0 0.0
      %511 = vmatprep.subr.mxu0 0.0
      %512 = vmatpush1.msra.mxu0 0.0
      %513 = vmatprep.subr.mxu0 0.0
      %514 = vmatpush1.msra.mxu0 0.0
      %515 = vmatprep.subr.mxu0 0.0
      %516 = vmatpush1.msra.mxu0 0.0
      %517 = vmatprep.subr.mxu0 0.0
      %518 = vmatpush1.msra.mxu0 0.0
      %519 = vmatprep.subr.mxu0 0.0
      %520 = vmatpush1.msra.mxu0 0.0
      %521 = vmatprep.subr.mxu0 0.0
      %522 = vmatpush1.msra.mxu0 0.0
      %523 = vmatprep.subr.mxu0 0.0
      %524 = vmatpush1.msra.mxu0 0.0
      %525 = vmatprep.subr.mxu0 0.0
      %526 = vmatpush1.msra.mxu0 0.0
      %527 = vmatprep.subr.mxu0 0.0
      %528 = vmatpush1.msra.mxu0 0.0
      %529 = vmatprep.subr.mxu0 0.0
      %530 = vmatpush1.msra.mxu0 0.0
      %531 = vmatprep.subr.mxu0 0.0
      %532 = vmatpush1.msra.mxu0 0.0
      %533 = vmatprep.subr.mxu0 0.0
      %534 = vmatpush1.msra.mxu0 0.0
      %535 = vmatprep.subr.mxu0 0.0
      %536 = vmatpush1.msra.mxu0 0.0
      %537 = vmatprep.subr.mxu0 0.0
      %538 = vmatpush1.msra.mxu0 0.0
      %539 = vmatprep.subr.mxu0 0.0
      %540 = vmatpush1.msra.mxu0 0.0
      %541 = vmatprep.subr.mxu0 0.0
      %542 = vmatpush1.msra.mxu0 0.0
      %543 = vmatprep.subr.mxu0 0.0
      %544 = vmatpush1.msra.mxu0 0.0
      %545 = vmatprep.subr.mxu0 0.0
      %546 = vmatpush1.msra.mxu0 0.0
      %547 = vmatprep.subr.mxu0 0.0
      %548 = vmatpush1.msra.mxu0 0.0
      %549 = vmatprep.subr.mxu0 0.0
      %550 = vmatpush1.msra.mxu0 0.0
      %551 = vmatprep.subr.mxu0 0.0
      %552 = vmatpush1.msra.mxu0 0.0
      %553 = vmatprep.subr.mxu0 0.0
      %554 = vmatpush1.msra.mxu0 0.0
      %555 = vmatprep.subr.mxu0 0.0
      %556 = vmatpush1.msra.mxu0 0.0
      %557 = vmatprep.subr.mxu0 0.0
      %558 = vmatpush1.msra.mxu0 0.0
      %559 = vmatprep.subr.mxu0 0.0
      %560 = vmatpush1.msra.mxu0 0.0
      %561 = vmatprep.subr.mxu0 0.0
      %562 = vmatpush1.msra.mxu0 0.0
      %563 = vmatprep.subr.mxu0 0.0
      %564 = vmatpush1.msra.mxu0 0.0
      %565 = vmatprep.subr.mxu0 0.0
      %566 = vmatpush1.msra.mxu0 0.0
      %567 = vmatprep.mubr.f32.mxu0 0.0
      %568 = vmatmul.mubr.f32.gmra.mrb[0].mxu0 %v501
      %v569 = vpop.f32.mrb[0].mxu0
      %v570 = vadd.f32 0.0, %v569
      %v571 = vpop.f32.mrb[0].mxu0
      %v572 = vadd.f32 0.0, %v571
      %573 = vdwg.mxu0
      %v576 = vcombine.low %v570, %v572
      %578 = vst [vmem:[%s275] sm:$0xff] %v576
      %v580 = vsub.f32 %v570, %v294
      %v581 = vsub.f32 %v572, %v298
      %v582 = vld [vmem:[%s281] sm:$0xff]
      %v583 = vld [vmem:[%s281 + $0x8] sm:$0xff]
      %v584 = vadd.f32 %v463, %v464
      %585 = vadd.xlane.f32.xlu0 %v584
      %v586 = vpop.xlane.xlu0 %585
      %v587 = vadd.f32 %v465, %v466
      %588 = vadd.xlane.f32.xlu0 %v587
      %v589 = vpop.xlane.xlu0 %588
      %v590 = vadd.f32 %v582, %v586
      %v591 = vadd.f32 %v583, %v589
      %vm592 = vcmask 7168
      %593 = vst.msk [vmem:[%s281] sm:$0xff] %vm592, %v590
      %594 = vst.msk [vmem:[%s281 + $0x8] sm:$0xff] %vm592, %v591
      %v595 = vld [vmem:[%s284] sm:$0x1]
      %v596 = vmul.f32 %v580, %v580
      %v597 = vmul.f32 %v581, %v581
      %v598 = vsel %vm306, %v596, 0.0
      %v599 = vsel %vm306, %v597, 0.0
      %v600 = vadd.f32 %v598, %v599
      %601 = vadd.xlane.f32.xlu0 %v600
      %v602 = vpop.xlane.xlu0 %601
      %v603 = vrot.slane %v602, 4
      %v604 = vadd.f32 %v602, %v603
      %v605 = vrot.slane %v604, 2
      %v606 = vadd.f32 %v604, %v605
      %v607 = vrot.slane %v606, 1
      %v608 = vadd.f32 %v606, %v607
      %s609 = vtos %v608
      %v610 = vstv %s609
      %v611 = vadd.f32 %v595, %v610
      %vm612 = vcmask 0
      %613 = vst.msk [vmem:[%s284] sm:$0x1] %vm612, %v611
      %s614 = smul.u32 2, %s22
      %p615 = scmp.lt.s32.totalorder %s21, 1
      %s616 = scalar_select %p615, %s21, 1
      %p617 = scmp.lt.s32.totalorder %s614, 1
      %s618 = scalar_select %p617, %s614, 1
      %s619 = smul.addr %s616, 2
      %s620 = sadd.s32 %s618, %s619
      %s621 = smul.addr %s620, 4
      %s622 = scalar_lea.vmem %s3, %s621
      %p623 = scmp.lt.s32.totalorder %s21, 1
      %s624 = scalar_select %p623, %s21, 1
      %s625 = smul.addr %s624, 2
      %s626 = smul.addr %s625, 8
      %s627 = scalar_lea.vmem %s4, %s626
      %p628 = scmp.lt.s32.totalorder %s21, 1
      %s629 = scalar_select %p628, %s21, 1
      %s630 = scalar_lea.vmem %s5, %s629
      // Predicated region
      $region37: #{vector_quantizer_forward.1} parent=31 // pred_check
        %p631 = pneg %p119
      $region38: #{vector_quantizer_forward.1} parent=31 // pred_check_branch
        %633 = sbr.rel (%p631) target = $region40
      $region39: #{vector_quantizer_forward.1} parent=31 // pred_region
        %s634 = smul.u32 2, %s22
      $region40: #{vector_quantizer_forward.1} parent=31 // pred_fallthru
        _
      // Predicated region
      $region41: #{vector_quantizer_forward.1} parent=31 // pred_check
        %p635 = pneg %p145
      $region42: #{vector_quantizer_forward.1} parent=31 // pred_check_branch
        %637 = sbr.rel (%p635) target = $region44
      $region43: #{vector_quantizer_forward.1} parent=31 // pred_region
        _
      $region44: #{vector_quantizer_forward.1} parent=31 // pred_fallthru
        _
      // Predicated region
      $region45: #{vector_quantizer_forward.1} parent=31 // pred_check
        %p638 = pneg %p171
      $region46: #{vector_quantizer_forward.1} parent=31 // pred_check_branch
        %640 = sbr.rel (%p638) target = $region48
      $region47: #{vector_quantizer_forward.1} parent=31 // pred_region
        _
      $region48: #{vector_quantizer_forward.1} parent=31 // pred_fallthru
        _
    $region32: #{vector_quantizer_forward.1} parent=5 // pred_fallthru
      _
    %p641 = scmp.le.s32.totalorder 2, %s12
    // Predicated region
    $region49: #{vector_quantizer_forward.1} parent=5 // pred_check
      %p642 = pneg %p641
    $region50: #{vector_quantizer_forward.1} parent=5 // pred_check_branch
      %644 = sbr.rel (%p642) target = $region52
    $region51: #{vector_quantizer_forward.1} parent=5 // pred_region
      %s645 = ssub.s32 %s12, 2
      // Predicated region
      $region53: #{vector_quantizer_forward.1} parent=51 // pred_check
        %p646 = pneg %p125
      $region54: #{vector_quantizer_forward.1} parent=51 // pred_check_branch
        %648 = sbr.rel (%p646) target = $region56
      $region55: #{vector_quantizer_forward.1} parent=51 // pred_region
        %s649 = smul.u32 2, %s24
        %p650 = scmp.lt.s32.totalorder %s23, 1
        %s651 = scalar_select %p650, %s23, 1
        %p652 = scmp.lt.s32.totalorder %s649, 1
        %s653 = scalar_select %p652, %s649, 1
        %s654 = smul.addr %s651, 2
        %s655 = sadd.s32 %s653, %s654
        %s656 = smul.addr %s655, 4
        %s657 = scalar_lea.vmem %s3, %s656
      $region56: #{vector_quantizer_forward.1} parent=51 // pred_fallthru
        _
      // Predicated region
      $region57: #{vector_quantizer_forward.1} parent=51 // pred_check
        %p658 = pneg %p151
      $region58: #{vector_quantizer_forward.1} parent=51 // pred_check_branch
        %660 = sbr.rel (%p658) target = $region60
      $region59: #{vector_quantizer_forward.1} parent=51 // pred_region
        %p661 = scmp.lt.s32.totalorder %s23, 1
        %s662 = scalar_select %p661, %s23, 1
        %s663 = smul.addr %s662, 2
        %s664 = smul.addr %s663, 8
        %s665 = scalar_lea.vmem %s4, %s664
      $region60: #{vector_quantizer_forward.1} parent=51 // pred_fallthru
        _
      // Predicated region
      $region61: #{vector_quantizer_forward.1} parent=51 // pred_check
        %p666 = pneg %p177
      $region62: #{vector_quantizer_forward.1} parent=51 // pred_check_branch
        %668 = sbr.rel (%p666) target = $region64
      $region63: #{vector_quantizer_forward.1} parent=51 // pred_region
        %p669 = scmp.lt.s32.totalorder %s23, 1
        %s670 = scalar_select %p669, %s23, 1
        %s671 = scalar_lea.vmem %s5, %s670
      $region64: #{vector_quantizer_forward.1} parent=51 // pred_fallthru
        _
    $region52: #{vector_quantizer_forward.1} parent=5 // pred_fallthru
      _
  $region6: #{vector_quantizer_forward.1} parent=0 // loop_footer
    %s16 = sadd.s32 1, %s12
  $region7: #{vector_quantizer_forward.1} parent=0 // loop_footer_branch
    %11 = sbr.rel target = $region3
  $region8: #{vector_quantizer_forward.1} parent=0 // loop_exit
    _

</llo_original>
